<compile_context>
chip_gen: v7x
topology: tpu7x:2x2x1
jax: 0.10.0
libtpu: 0.0.40
codegen_flags: <defaults>
</compile_context>

<pallas_src>
import jax
import jax.numpy as jnp
from jax.experimental import pallas as pl
from jax.experimental.pallas import tpu as pltpu

LANE = 128


def _round_up(x: int, m: int) -> int:
    return ((x + m - 1) // m) * m


def _make_actor_kernel(num_hidden_layers: int, activation: str = "linear"):
    """Pallas kernel: `num_hidden_layers` (Linear+ReLU) layers + fused linear heads.

    Operates in transposed (feature, batch) layout; batch lives on the lane axis.
    refs = (xT, w0, b0, w1, b1, ..., w_out, b_out, outT)
    """

    def kernel(*refs):
        x_ref = refs[0]
        out_ref = refs[-1]
        h = x_ref[...].astype(jnp.bfloat16)          # (in_dim, tb) f32 -> bf16 in-kernel
        idx = 1
        for _ in range(num_hidden_layers):
            w = refs[idx][...]                        # bf16 (unit, in)  -- torch layout
            b = refs[idx + 1][...]                    # f32  (unit, 1)
            idx += 2
            h = jnp.dot(w, h, preferred_element_type=jnp.float32) + b
            h = jnp.maximum(h, 0.0).astype(jnp.bfloat16)   # ReLU in f32, pack to bf16
        w_out = refs[idx][...]                        # bf16 (out_dim, unit)
        b_out = refs[idx + 1][...]                    # f32  (out_dim, 1)
        y = jnp.dot(w_out, h, preferred_element_type=jnp.float32) + b_out
        if activation == "sigmoid":
            y = jax.nn.sigmoid(y)
        elif activation == "tanh":
            y = jnp.tanh(y)
        # TODO(synk): 'softmax' head activation (per-head normalization over action
        # components) not implemented; module default is 'linear'.
        out_ref[...] = y

    return kernel


def prepare_actor_params(hidden_params, out_heads):
    """One-time parameter preparation (hoisted out of the per-call path).

    hidden_params: list of (W (unit,in), b (unit,))  -- torch nn.Linear layout
    out_heads:     list of (W_o (shape,unit), b_o (shape,)) per action head
    Returns a flat tuple of kernel operands:
      (w0_bf16, b0_f32(unit,1), ..., w_out_bf16(out_dim,unit), b_out_f32(out_dim,1))
    """
    ops = []
    for w, b in hidden_params:
        ops.append(jnp.asarray(w, jnp.bfloat16))
        ops.append(jnp.asarray(b, jnp.float32).reshape(-1, 1))
    out_w = jnp.concatenate([w for w, _ in out_heads], axis=0)   # concat heads (dim=1 in torch)
    out_b = jnp.concatenate([b for _, b in out_heads], axis=0)
    ops.append(jnp.asarray(out_w, jnp.bfloat16))
    ops.append(jnp.asarray(out_b, jnp.float32).reshape(-1, 1))
    return tuple(ops)


def ddpg_actor_forward(x, prepared_params, *, activation: str = "linear", block_b: int = 2048):
    """Run the actor MLP in a single batch-tiled Pallas call (transposed layout).

    x:               (B, ...) -- flattened to (B, input_shape) like torch.flatten(start_dim=1)
    prepared_params: output of prepare_actor_params (reused across calls)
    Returns (B, sum(action_shape)) float32.
    """
    params = prepared_params
    num_hidden = (len(params) - 2) // 2
    x = x.reshape(x.shape[0], -1)
    B, in_dim = x.shape
    unit = params[0].shape[0]
    out_dim = params[-2].shape[0]

    # --- batch tile on the lane axis: multiple of 128, few fat blocks ---
    tb = min(block_b, _round_up(B, LANE))
    tb = max(LANE, _round_up(tb, LANE))
    b_pad = _round_up(B, tb)
    # v7x megacore: prefer >= 2 parallel batch blocks when the batch is big enough.
    if b_pad // tb == 1 and B > LANE:
        tb = _round_up(-(-B // 2), LANE)
        b_pad = _round_up(B, tb)

    # f32 input; bf16 cast happens inside the kernel (no extra wrapper cast pass).
    xT = jnp.transpose(x).astype(jnp.float32)        # (in_dim, B)
    if b_pad != B:
        xT = jnp.pad(xT, ((0, 0), (0, b_pad - B)))

    grid = (b_pad // tb,)

    # x / out tiled over batch (lane axis); all params full-extent, VMEM-resident.
    in_specs = [pl.BlockSpec((in_dim, tb), lambda i: (0, i))]
    for p in params:
        in_specs.append(pl.BlockSpec(p.shape, lambda i: (0, 0)))
    out_specs = pl.BlockSpec((out_dim, tb), lambda i: (0, i))

    # Cost estimate from the un-padded head width.
    flops = 2 * b_pad * (in_dim * unit + unit * unit * max(0, num_hidden - 1) + unit * out_dim)
    param_bytes = sum(int(p.size) * p.dtype.itemsize for p in params)
    bytes_accessed = b_pad * in_dim * 4 + b_pad * out_dim * 4 + param_bytes
    cost = pl.CostEstimate(flops=flops, transcendentals=0, bytes_accessed=bytes_accessed)

    # VMEM budget: double-buffered x/out tiles + resident params + activation headroom.
    tile_bytes = 2 * tb * (in_dim * 4 + out_dim * 4) + 4 * tb * unit * 4
    vmem_limit = int(min(64 << 20, max(8 << 20, 2 * (tile_bytes + param_bytes))))

    outT = pl.pallas_call(
        _make_actor_kernel(num_hidden, activation),
        out_shape=jax.ShapeDtypeStruct((out_dim, b_pad), jnp.float32),
        grid=grid,
        in_specs=in_specs,
        out_specs=out_specs,
        compiler_params=pltpu.CompilerParams(
            dimension_semantics=("parallel",),
            vmem_limit_bytes=vmem_limit,
        ),
        cost_estimate=cost,
    )(xT, *params)

    return outT[:, :B].T


def init_params(key, input_shape, unit_num, layer_num, action_shape):
    """Deterministic synthetic parameter init in torch nn.Linear layout (out, in)."""
    hidden_params = []
    in_dim = input_shape
    for _ in range(layer_num):
        key, kw, kb = jax.random.split(key, 3)
        w = jax.random.normal(kw, (unit_num, in_dim), jnp.float32) * 0.1
        b = jax.random.normal(kb, (unit_num,), jnp.float32) * 0.1
        hidden_params.append((w, b))
        in_dim = unit_num

    out_heads = []
    for shape in action_shape:
        key, kw, kb = jax.random.split(key, 3)
        wo = jax.random.normal(kw, (shape, unit_num), jnp.float32) * 0.1
        bo = jax.random.normal(kb, (shape,), jnp.float32) * 0.1
        out_heads.append((wo, bo))
    return hidden_params, out_heads


def reference_forward_f32(x, hidden_params, out_heads):
    """Pure-JAX f32 reference (matches the PyTorch module, activation='linear')."""
    h = x.reshape(x.shape[0], -1)
    for w, b in hidden_params:
        h = jnp.maximum(h @ w.T + b, 0.0)
    outs = [h @ wo.T + bo for wo, bo in out_heads]
    return jnp.concatenate(outs, axis=1)


def reference_forward_bf16(x, hidden_params, out_heads):
    """Pure-JAX reference with the same bf16-operand / f32-accumulate recipe as the kernel."""
    h = x.reshape(x.shape[0], -1).astype(jnp.bfloat16)
    for w, b in hidden_params:
        h = jnp.dot(h, w.T.astype(jnp.bfloat16), preferred_element_type=jnp.float32) + b
        h = jnp.maximum(h, 0.0).astype(jnp.bfloat16)
    outs = [
        jnp.dot(h, wo.T.astype(jnp.bfloat16), preferred_element_type=jnp.float32) + bo
        for wo, bo in out_heads
    ]
    return jnp.concatenate(outs, axis=1)


if __name__ == "__main__":
    # Module hyperparameters (consistent with the PyTorch __init__):
    #   state_shape  = [6, 10]  -> input_shape = 16
    #   action_shape = [4, 4]   -> two linear heads, concatenated -> 8
    #   unit_num = 32, layer_num = 2, activation = 'linear'
    state_shape = [6, 10]
    action_shape = [4, 4]
    input_shape = sum(state_shape)
    unit_num = 32
    layer_num = 2

    key = jax.random.PRNGKey(0)
    key, kx, kx2 = jax.random.split(key, 3)
    hidden_params, out_heads = init_params(key, input_shape, unit_num, layer_num, action_shape)

    # One-time parameter prep (casts / head concat / bias reshape), reused across calls.
    prepared = prepare_actor_params(hidden_params, out_heads)

    # --- small batch: single lane-dense block, grid=(1,) (batch padded 2 -> 128) ---
    batch = 2
    x = jax.random.normal(kx, (batch, input_shape), jnp.float32)
    out = jax.block_until_ready(ddpg_actor_forward(x, prepared))
    assert out.shape == (batch, sum(action_shape))
    ref32 = reference_forward_f32(x, hidden_params, out_heads)
    ref16 = reference_forward_bf16(x, hidden_params, out_heads)
    assert jnp.allclose(out, ref16, atol=2e-3, rtol=2e-3), "mismatch vs bf16-matched reference"
    assert jnp.allclose(out, ref32, atol=2e-2, rtol=2e-2), "mismatch vs f32 reference"

    # --- larger batch: default tiling -> 2 parallel blocks (v7x megacore path), and an
    #     explicit small block_b -> 3-block grid exercising multi-step pipelining ---
    batch2 = 300
    x2 = jax.random.normal(kx2, (batch2, input_shape), jnp.float32)
    out2 = jax.block_until_ready(ddpg_actor_forward(x2, prepared))
    out2b = jax.block_until_ready(ddpg_actor_forward(x2, prepared, block_b=128))
    ref2_32 = reference_forward_f32(x2, hidden_params, out_heads)
    ref2_16 = reference_forward_bf16(x2, hidden_params, out_heads)
    for o in (out2, out2b):
        assert o.shape == (batch2, sum(action_shape))
        assert jnp.allclose(o, ref2_16, atol=2e-3, rtol=2e-3), "mismatch vs bf16-matched reference"
        assert jnp.allclose(o, ref2_32, atol=2e-2, rtol=2e-2), "mismatch vs f32 reference"

    print("KERNEL_OK")
</pallas_src>

<mosaic_0001>
module attributes {stable_mosaic.version = 11 : i64} {
  func.func @kernel(%arg0: i32, %arg1: memref<16x128xf32, #tpu.memory_space<vmem>>, %arg2: memref<32x16xbf16, #tpu.memory_space<vmem>>, %arg3: memref<32x1xf32, #tpu.memory_space<vmem>>, %arg4: memref<32x32xbf16, #tpu.memory_space<vmem>>, %arg5: memref<32x1xf32, #tpu.memory_space<vmem>>, %arg6: memref<8x32xbf16, #tpu.memory_space<vmem>>, %arg7: memref<8x1xf32, #tpu.memory_space<vmem>>, %arg8: memref<8x128xf32, #tpu.memory_space<vmem>>) attributes {dimension_semantics = [#tpu.dimension_semantics<parallel>], iteration_bounds = array<i64: 1>, scalar_prefetch = 0 : i64, scratch_operands = 0 : i64, tpu.core_type = #tpu.core_type<tc>, window_params = [{transform_indices = @transform_0, window_bounds = array<i64: 16, 128>}, {pipeline_mode = #tpu.pipeline_mode<synchronous>, transform_indices = @transform_1, window_bounds = array<i64: 32, 16>}, {pipeline_mode = #tpu.pipeline_mode<synchronous>, transform_indices = @transform_2, window_bounds = array<i64: 32, 1>}, {pipeline_mode = #tpu.pipeline_mode<synchronous>, transform_indices = @transform_3, window_bounds = array<i64: 32, 32>}, {pipeline_mode = #tpu.pipeline_mode<synchronous>, transform_indices = @transform_4, window_bounds = array<i64: 32, 1>}, {pipeline_mode = #tpu.pipeline_mode<synchronous>, transform_indices = @transform_5, window_bounds = array<i64: 8, 32>}, {pipeline_mode = #tpu.pipeline_mode<synchronous>, transform_indices = @transform_6, window_bounds = array<i64: 8, 1>}, {transform_indices = @transform_7, window_bounds = array<i64: 8, 128>}]} {
    %c0 = arith.constant 0 : index
    %c0_0 = arith.constant 0 : index
    %0 = vector.load %arg1[%c0, %c0_0] : memref<16x128xf32, #tpu.memory_space<vmem>>, vector<16x128xf32>
    %1 = arith.truncf %0 : vector<16x128xf32> to vector<16x128xbf16>
    %c0_1 = arith.constant 0 : index
    %c0_2 = arith.constant 0 : index
    %2 = vector.load %arg2[%c0_1, %c0_2] : memref<32x16xbf16, #tpu.memory_space<vmem>>, vector<32x16xbf16>
    %c0_3 = arith.constant 0 : index
    %c0_4 = arith.constant 0 : index
    %3 = vector.load %arg3[%c0_3, %c0_4] : memref<32x1xf32, #tpu.memory_space<vmem>>, vector<32x1xf32>
    %cst = arith.constant dense<0.000000e+00> : vector<32x128xf32>
    %4 = tpu.matmul %2, %1, %cst {dimension_numbers = #tpu.dot_dimension_numbers<[1], [0], [0], [1], [0, 0, 1, 1], [], []>} : vector<32x16xbf16>, vector<16x128xbf16>, vector<32x128xf32> -> vector<32x128xf32>
    %5 = vector.broadcast %3 : vector<32x1xf32> to vector<32x128xf32>
    %6 = arith.addf %4, %5 : vector<32x128xf32>
    %cst_5 = arith.constant 0.000000e+00 : f32
    %7 = vector.broadcast %cst_5 : f32 to vector<32x128xf32>
    %8 = arith.maximumf %6, %7 : vector<32x128xf32>
    %9 = arith.truncf %8 : vector<32x128xf32> to vector<32x128xbf16>
    %c0_6 = arith.constant 0 : index
    %c0_7 = arith.constant 0 : index
    %10 = vector.load %arg4[%c0_6, %c0_7] : memref<32x32xbf16, #tpu.memory_space<vmem>>, vector<32x32xbf16>
    %c0_8 = arith.constant 0 : index
    %c0_9 = arith.constant 0 : index
    %11 = vector.load %arg5[%c0_8, %c0_9] : memref<32x1xf32, #tpu.memory_space<vmem>>, vector<32x1xf32>
    %cst_10 = arith.constant dense<0.000000e+00> : vector<32x128xf32>
    %12 = tpu.matmul %10, %9, %cst_10 {dimension_numbers = #tpu.dot_dimension_numbers<[1], [0], [0], [1], [0, 0, 1, 1], [], []>} : vector<32x32xbf16>, vector<32x128xbf16>, vector<32x128xf32> -> vector<32x128xf32>
    %13 = vector.broadcast %11 : vector<32x1xf32> to vector<32x128xf32>
    %14 = arith.addf %12, %13 : vector<32x128xf32>
    %cst_11 = arith.constant 0.000000e+00 : f32
    %15 = vector.broadcast %cst_11 : f32 to vector<32x128xf32>
    %16 = arith.maximumf %14, %15 : vector<32x128xf32>
    %17 = arith.truncf %16 : vector<32x128xf32> to vector<32x128xbf16>
    %c0_12 = arith.constant 0 : index
    %c0_13 = arith.constant 0 : index
    %18 = vector.load %arg6[%c0_12, %c0_13] : memref<8x32xbf16, #tpu.memory_space<vmem>>, vector<8x32xbf16>
    %c0_14 = arith.constant 0 : index
    %c0_15 = arith.constant 0 : index
    %19 = vector.load %arg7[%c0_14, %c0_15] : memref<8x1xf32, #tpu.memory_space<vmem>>, vector<8x1xf32>
    %cst_16 = arith.constant dense<0.000000e+00> : vector<8x128xf32>
    %20 = tpu.matmul %18, %17, %cst_16 {dimension_numbers = #tpu.dot_dimension_numbers<[1], [0], [0], [1], [0, 0, 1, 1], [], []>} : vector<8x32xbf16>, vector<32x128xbf16>, vector<8x128xf32> -> vector<8x128xf32>
    %21 = vector.broadcast %19 : vector<8x1xf32> to vector<8x128xf32>
    %22 = arith.addf %20, %21 : vector<8x128xf32>
    %c0_17 = arith.constant 0 : index
    %c0_18 = arith.constant 0 : index
    %23 = vector.load %arg8[%c0_17, %c0_18] : memref<8x128xf32, #tpu.memory_space<vmem>>, vector<8x128xf32>
    tpu.vector_store %arg8[%c0_17, %c0_18], %22 {strides = array<i32>} : memref<8x128xf32, #tpu.memory_space<vmem>>, vector<8x128xf32>,
    return
  }
  func.func @transform_0(%arg0: i32) -> (i32, i32) {
    %c0_i32 = arith.constant 0 : i32
    %c0_i32_0 = arith.constant 0 : i32
    return %c0_i32, %arg0 : i32, i32
  }
  func.func @transform_1(%arg0: i32) -> (i32, i32) {
    %c0_i32 = arith.constant 0 : i32
    %c0_i32_0 = arith.constant 0 : i32
    %c0_i32_1 = arith.constant 0 : i32
    return %c0_i32, %c0_i32_0 : i32, i32
  }
  func.func @transform_2(%arg0: i32) -> (i32, i32) {
    %c0_i32 = arith.constant 0 : i32
    %c0_i32_0 = arith.constant 0 : i32
    %c0_i32_1 = arith.constant 0 : i32
    return %c0_i32, %c0_i32_0 : i32, i32
  }
  func.func @transform_3(%arg0: i32) -> (i32, i32) {
    %c0_i32 = arith.constant 0 : i32
    %c0_i32_0 = arith.constant 0 : i32
    %c0_i32_1 = arith.constant 0 : i32
    return %c0_i32, %c0_i32_0 : i32, i32
  }
  func.func @transform_4(%arg0: i32) -> (i32, i32) {
    %c0_i32 = arith.constant 0 : i32
    %c0_i32_0 = arith.constant 0 : i32
    %c0_i32_1 = arith.constant 0 : i32
    return %c0_i32, %c0_i32_0 : i32, i32
  }
  func.func @transform_5(%arg0: i32) -> (i32, i32) {
    %c0_i32 = arith.constant 0 : i32
    %c0_i32_0 = arith.constant 0 : i32
    %c0_i32_1 = arith.constant 0 : i32
    return %c0_i32, %c0_i32_0 : i32, i32
  }
  func.func @transform_6(%arg0: i32) -> (i32, i32) {
    %c0_i32 = arith.constant 0 : i32
    %c0_i32_0 = arith.constant 0 : i32
    %c0_i32_1 = arith.constant 0 : i32
    return %c0_i32, %c0_i32_0 : i32, i32
  }
  func.func @transform_7(%arg0: i32) -> (i32, i32) {
    %c0_i32 = arith.constant 0 : i32
    %c0_i32_0 = arith.constant 0 : i32
    return %c0_i32, %arg0 : i32, i32
  }
}

</mosaic_0001>

<llo_original>
// kernel: tpu_custom_call.1
$region0: #{tpu_custom_call.1}
  #allocation0 [shape = 'u32[]', space=smem, size = 0x4, offset = 0x4, fixed_abs, tag = 'smem constant byte address 0x4 - core index']
  #allocation1 [shape = 'u32[144,128]{1,0:T(1,128)}', space=vmem, size = 0x12000, scoped, tag = 'internal scratch']
  %s0 = inlined_call_operand.vmem [shape: f32[16,128], index: 0, kind: input, shape index: {}]
  %s1 = inlined_call_operand.vmem [shape: bf16[32,16], index: 1, kind: input, shape index: {}]
  %s2 = inlined_call_operand.vmem [shape: f32[32,1], index: 2, kind: input, shape index: {}]
  %s3 = inlined_call_operand.vmem [shape: bf16[32,32], index: 3, kind: input, shape index: {}]
  %s4 = inlined_call_operand.vmem [shape: f32[32,1], index: 4, kind: input, shape index: {}]
  %s5 = inlined_call_operand.vmem [shape: bf16[8,32], index: 5, kind: input, shape index: {}]
  %s6 = inlined_call_operand.vmem [shape: f32[8,1], index: 6, kind: input, shape index: {}]
  %s7 = inlined_call_operand.hbm [shape: f32[8,128], index: 7, kind: output, shape index: {}]
  %s8 = sld [smem:[#allocation0]]
  $region38: #{tpu_custom_call.1} parent=0
    _
  %s10 = ssub.s32 1, %s8
  %s11 = scalar_select 0, %s10, %s8
  $region1: #{tpu_custom_call.1} parent=0
    #allocation2 [shape = 'u8[4096]{0}', space=vmem, size = 0x1000, scoped, tag = 'output window, operand 0, single buffered']
    #allocation3 [shape = 's32[1]{0}', space=sflag, size = 0x4, scoped, tag = 'scoped memory for tpu_custom_call.1']
    %12 = vsyncpa [#allocation3], 0
    // Predicated region
    $region2: #{tpu_custom_call.1} parent=1 // pred_check
      _
    $region3: #{tpu_custom_call.1} parent=1 // pred_check_branch
      %14 = sbr.rel (0) target = $region5
    $region4: #{tpu_custom_call.1} parent=1 // pred_region
      _
    $region5: #{tpu_custom_call.1} parent=1 // pred_fallthru
      _
    // Predicated region
    $region6: #{tpu_custom_call.1} parent=1 // pred_check
      _
    $region7: #{tpu_custom_call.1} parent=1 // pred_check_branch
      %16 = sbr.rel (0) target = $region9
    $region8: #{tpu_custom_call.1} parent=1 // pred_region
      _
    $region9: #{tpu_custom_call.1} parent=1 // pred_fallthru
      _
    // Predicated region
    $region10: #{tpu_custom_call.1} parent=1 // pred_check
      _
    $region11: #{tpu_custom_call.1} parent=1 // pred_check_branch
      %18 = sbr.rel (0) target = $region13
    $region12: #{tpu_custom_call.1} parent=1 // pred_region
      _
    $region13: #{tpu_custom_call.1} parent=1 // pred_fallthru
      _
    // Predicated region
    $region14: #{tpu_custom_call.1} parent=1 // pred_check
      _
    $region15: #{tpu_custom_call.1} parent=1 // pred_check_branch
      %20 = sbr.rel (0) target = $region17
    $region16: #{tpu_custom_call.1} parent=1 // pred_region
      _
    $region17: #{tpu_custom_call.1} parent=1 // pred_fallthru
      _
    // Predicated region
    $region18: #{tpu_custom_call.1} parent=1 // pred_check
      _
    $region19: #{tpu_custom_call.1} parent=1 // pred_check_branch
      %22 = sbr.rel (0) target = $region21
    $region20: #{tpu_custom_call.1} parent=1 // pred_region
      _
    $region21: #{tpu_custom_call.1} parent=1 // pred_fallthru
      _
    // Predicated region
    $region22: #{tpu_custom_call.1} parent=1 // pred_check
      _
    $region23: #{tpu_custom_call.1} parent=1 // pred_check_branch
      %24 = sbr.rel (0) target = $region25
    $region24: #{tpu_custom_call.1} parent=1 // pred_region
      _
    $region25: #{tpu_custom_call.1} parent=1 // pred_fallthru
      _
    // Predicated region
    $region26: #{tpu_custom_call.1} parent=1 // pred_check
      _
    $region27: #{tpu_custom_call.1} parent=1 // pred_check_branch
      %26 = sbr.rel (0) target = $region29
    $region28: #{tpu_custom_call.1} parent=1 // pred_region
      _
    $region29: #{tpu_custom_call.1} parent=1 // pred_fallthru
      _
    %v28 = vld [vmem:[%s0] sm:$0xff]
    %v29 = vld [vmem:[%s0 + $0x8] sm:$0xff]
    %v30 = vpack.c.bf16 %v29, %v28
    %v31 = vld [vmem:[%s1] sm:$0xf]
    %v32 = vld [vmem:[%s1 + $0x4] sm:$0xf]
    %v33 = vld [vmem:[%s1 + $0x8] sm:$0xf]
    %v34 = vld [vmem:[%s1 + $0xc] sm:$0xf]
    %v35 = vld [vmem:[%s2] sm:$0xff]
    %v36 = vld [vmem:[%s2 + $0x8] sm:$0xff]
    %v37 = vld [vmem:[%s2 + $0x10] sm:$0xff]
    %v38 = vld [vmem:[%s2 + $0x18] sm:$0xff]
    %40 = vset.pattern.permute.xlu0 0
    %41 = vperm.xlu0 %40, %v35
    %v42 = vpop.permute.xlu0 %41
    %45 = vset.pattern.permute.xlu0 0
    %46 = vperm.xlu0 %45, %v36
    %v47 = vpop.permute.xlu0 %46
    %50 = vset.pattern.permute.xlu0 0
    %51 = vperm.xlu0 %50, %v37
    %v52 = vpop.permute.xlu0 %51
    %55 = vset.pattern.permute.xlu0 0
    %56 = vperm.xlu0 %55, %v38
    %v57 = vpop.permute.xlu0 %56
    %v63 = vunpack.c.l.b16 %v31
    %v64 = vunpack.c.l.b16 %v32
    %v65 = vunpack.c.l.b16 %v33
    %v66 = vunpack.c.l.b16 %v34
    %v67 = vpack.c.b16 %v64, %v63
    %v68 = vpack.c.b16 %v66, %v65
    %vm69 = vcmask 130048
    %v71 = vsel %vm69, %v67, 0
    %v74 = vsel %vm69, %v68, 0
    %76 = vmatprep.subr.bf16.mxu0 0
    %77 = vmatpush1.bf16.msra.mxu0 %v30
    %78 = vmatprep.subr.bf16.mxu0 0
    %79 = vmatpush1.bf16.msra.mxu0 0
    %80 = vmatprep.subr.bf16.mxu0 0
    %81 = vmatpush1.bf16.msra.mxu0 0
    %82 = vmatprep.subr.bf16.mxu0 0
    %83 = vmatpush1.bf16.msra.mxu0 0
    %84 = vmatprep.subr.bf16.mxu0 0
    %85 = vmatpush1.bf16.msra.mxu0 0
    %86 = vmatprep.subr.bf16.mxu0 0
    %87 = vmatpush1.bf16.msra.mxu0 0
    %88 = vmatprep.subr.bf16.mxu0 0
    %89 = vmatpush1.bf16.msra.mxu0 0
    %90 = vmatprep.subr.bf16.mxu0 0
    %91 = vmatpush1.bf16.msra.mxu0 0
    %92 = vmatprep.subr.bf16.mxu0 0
    %93 = vmatpush1.bf16.msra.mxu0 0
    %94 = vmatprep.subr.bf16.mxu0 0
    %95 = vmatpush1.bf16.msra.mxu0 0
    %96 = vmatprep.subr.bf16.mxu0 0
    %97 = vmatpush1.bf16.msra.mxu0 0
    %98 = vmatprep.subr.bf16.mxu0 0
    %99 = vmatpush1.bf16.msra.mxu0 0
    %100 = vmatprep.subr.bf16.mxu0 0
    %101 = vmatpush1.bf16.msra.mxu0 0
    %102 = vmatprep.subr.bf16.mxu0 0
    %103 = vmatpush1.bf16.msra.mxu0 0
    %104 = vmatprep.subr.bf16.mxu0 0
    %105 = vmatpush1.bf16.msra.mxu0 0
    %106 = vmatprep.subr.bf16.mxu0 0
    %107 = vmatpush1.bf16.msra.mxu0 0
    %108 = vmatprep.mubr.bf16.mxu0 0
    %109 = vmatmul.mubr.bf16.gmra.mrb[0].mxu0 %v71
    %v110 = vpop.f32.mrb[0].mxu0
    %v111 = vadd.f32 %v42, %v110
    %v112 = vpop.f32.mrb[0].mxu0
    %v113 = vpop.f32.mrb[0].mxu0
    %v114 = vadd.f32 %v47, %v113
    %v115 = vpop.f32.mrb[0].mxu0
    %116 = vmatprep.mubr.bf16.mxu0 0
    %117 = vmatmul.mubr.bf16.gmra.mrb[0].mxu0 %v74
    %v118 = vpop.f32.mrb[0].mxu0
    %v119 = vadd.f32 %v52, %v118
    %v120 = vpop.f32.mrb[0].mxu0
    %v121 = vpop.f32.mrb[0].mxu0
    %v122 = vadd.f32 %v57, %v121
    %v123 = vpop.f32.mrb[0].mxu0
    %124 = vdwg.mxu0
    %v125 = vmax.f32 %v111, 0.0
    %v126 = vmax.f32 %v114, 0.0
    %v127 = vmax.f32 %v119, 0.0
    %v128 = vmax.f32 %v122, 0.0
    %v129 = vpack.c.bf16 %v126, %v125
    %v130 = vpack.c.bf16 %v128, %v127
    %v131 = vld [vmem:[%s3] sm:$0xf]
    %v132 = vld [vmem:[%s3 + $0x4] sm:$0xf]
    %v133 = vld [vmem:[%s3 + $0x8] sm:$0xf]
    %v134 = vld [vmem:[%s3 + $0xc] sm:$0xf]
    %v135 = vld [vmem:[%s4] sm:$0xff]
    %v136 = vld [vmem:[%s4 + $0x8] sm:$0xff]
    %v137 = vld [vmem:[%s4 + $0x10] sm:$0xff]
    %v138 = vld [vmem:[%s4 + $0x18] sm:$0xff]
    %140 = vset.pattern.permute.xlu0 0
    %141 = vperm.xlu0 %140, %v135
    %v142 = vpop.permute.xlu0 %141
    %145 = vset.pattern.permute.xlu0 0
    %146 = vperm.xlu0 %145, %v136
    %v147 = vpop.permute.xlu0 %146
    %150 = vset.pattern.permute.xlu0 0
    %151 = vperm.xlu0 %150, %v137
    %v152 = vpop.permute.xlu0 %151
    %155 = vset.pattern.permute.xlu0 0
    %156 = vperm.xlu0 %155, %v138
    %v157 = vpop.permute.xlu0 %156
    %v163 = vunpack.c.l.b16 %v131
    %v164 = vunpack.c.l.b16 %v132
    %v165 = vunpack.c.l.b16 %v133
    %v166 = vunpack.c.l.b16 %v134
    %v167 = vpack.c.b16 %v164, %v163
    %v168 = vpack.c.b16 %v166, %v165
    %vm169 = vcmask 261120
    %v171 = vsel %vm169, %v167, 0
    %v174 = vsel %vm169, %v168, 0
    %176 = vmatprep.subr.bf16.mxu0 0
    %177 = vmatpush1.bf16.msra.mxu0 %v129
    %178 = vmatprep.subr.bf16.mxu0 0
    %179 = vmatpush1.bf16.msra.mxu0 %v130
    %180 = vmatprep.subr.bf16.mxu0 0
    %181 = vmatpush1.bf16.msra.mxu0 0
    %182 = vmatprep.subr.bf16.mxu0 0
    %183 = vmatpush1.bf16.msra.mxu0 0
    %184 = vmatprep.subr.bf16.mxu0 0
    %185 = vmatpush1.bf16.msra.mxu0 0
    %186 = vmatprep.subr.bf16.mxu0 0
    %187 = vmatpush1.bf16.msra.mxu0 0
    %188 = vmatprep.subr.bf16.mxu0 0
    %189 = vmatpush1.bf16.msra.mxu0 0
    %190 = vmatprep.subr.bf16.mxu0 0
    %191 = vmatpush1.bf16.msra.mxu0 0
    %192 = vmatprep.subr.bf16.mxu0 0
    %193 = vmatpush1.bf16.msra.mxu0 0
    %194 = vmatprep.subr.bf16.mxu0 0
    %195 = vmatpush1.bf16.msra.mxu0 0
    %196 = vmatprep.subr.bf16.mxu0 0
    %197 = vmatpush1.bf16.msra.mxu0 0
    %198 = vmatprep.subr.bf16.mxu0 0
    %199 = vmatpush1.bf16.msra.mxu0 0
    %200 = vmatprep.subr.bf16.mxu0 0
    %201 = vmatpush1.bf16.msra.mxu0 0
    %202 = vmatprep.subr.bf16.mxu0 0
    %203 = vmatpush1.bf16.msra.mxu0 0
    %204 = vmatprep.subr.bf16.mxu0 0
    %205 = vmatpush1.bf16.msra.mxu0 0
    %206 = vmatprep.subr.bf16.mxu0 0
    %207 = vmatpush1.bf16.msra.mxu0 0
    %208 = vmatprep.mubr.bf16.mxu0 0
    %209 = vmatmul.mubr.bf16.gmra.mrb[0].mxu0 %v171
    %v210 = vpop.f32.mrb[0].mxu0
    %v211 = vadd.f32 %v142, %v210
    %v212 = vpop.f32.mrb[0].mxu0
    %v213 = vpop.f32.mrb[0].mxu0
    %v214 = vadd.f32 %v147, %v213
    %v215 = vpop.f32.mrb[0].mxu0
    %216 = vmatprep.mubr.bf16.mxu0 0
    %217 = vmatmul.mubr.bf16.gmra.mrb[0].mxu0 %v174
    %v218 = vpop.f32.mrb[0].mxu0
    %v219 = vadd.f32 %v152, %v218
    %v220 = vpop.f32.mrb[0].mxu0
    %v221 = vpop.f32.mrb[0].mxu0
    %v222 = vadd.f32 %v157, %v221
    %v223 = vpop.f32.mrb[0].mxu0
    %224 = vdwg.mxu0
    %v225 = vmax.f32 %v211, 0.0
    %v226 = vmax.f32 %v214, 0.0
    %v227 = vmax.f32 %v219, 0.0
    %v228 = vmax.f32 %v222, 0.0
    %v229 = vpack.c.bf16 %v226, %v225
    %v230 = vpack.c.bf16 %v228, %v227
    %v231 = vld [vmem:[%s5] sm:$0xf]
    %v232 = vld [vmem:[%s6] sm:$0xff]
    %234 = vset.pattern.permute.xlu0 0
    %235 = vperm.xlu0 %234, %v232
    %v236 = vpop.permute.xlu0 %235
    %v239 = vsel %vm169, %v231, 0
    %241 = vmatprep.subr.bf16.mxu0 0
    %242 = vmatpush1.bf16.msra.mxu0 %v229
    %243 = vmatprep.subr.bf16.mxu0 0
    %244 = vmatpush1.bf16.msra.mxu0 %v230
    %245 = vmatprep.subr.bf16.mxu0 0
    %246 = vmatpush1.bf16.msra.mxu0 0
    %247 = vmatprep.subr.bf16.mxu0 0
    %248 = vmatpush1.bf16.msra.mxu0 0
    %249 = vmatprep.subr.bf16.mxu0 0
    %250 = vmatpush1.bf16.msra.mxu0 0
    %251 = vmatprep.subr.bf16.mxu0 0
    %252 = vmatpush1.bf16.msra.mxu0 0
    %253 = vmatprep.subr.bf16.mxu0 0
    %254 = vmatpush1.bf16.msra.mxu0 0
    %255 = vmatprep.subr.bf16.mxu0 0
    %256 = vmatpush1.bf16.msra.mxu0 0
    %257 = vmatprep.subr.bf16.mxu0 0
    %258 = vmatpush1.bf16.msra.mxu0 0
    %259 = vmatprep.subr.bf16.mxu0 0
    %260 = vmatpush1.bf16.msra.mxu0 0
    %261 = vmatprep.subr.bf16.mxu0 0
    %262 = vmatpush1.bf16.msra.mxu0 0
    %263 = vmatprep.subr.bf16.mxu0 0
    %264 = vmatpush1.bf16.msra.mxu0 0
    %265 = vmatprep.subr.bf16.mxu0 0
    %266 = vmatpush1.bf16.msra.mxu0 0
    %267 = vmatprep.subr.bf16.mxu0 0
    %268 = vmatpush1.bf16.msra.mxu0 0
    %269 = vmatprep.subr.bf16.mxu0 0
    %270 = vmatpush1.bf16.msra.mxu0 0
    %271 = vmatprep.subr.bf16.mxu0 0
    %272 = vmatpush1.bf16.msra.mxu0 0
    %273 = vmatprep.mubr.bf16.mxu0 0
    %274 = vmatmul.mubr.bf16.gmra.mrb[0].mxu0 %v239
    %v275 = vpop.f32.mrb[0].mxu0
    %v276 = vadd.f32 %v236, %v275
    %v277 = vpop.f32.mrb[0].mxu0
    %v278 = vpop.f32.mrb[0].mxu0
    %v279 = vpop.f32.mrb[0].mxu0
    %280 = vdwg.mxu0
    %281 = vst [vmem:[#allocation2] sm:$0xff] %v276
    // Predicated region
    $region30: #{tpu_custom_call.1} parent=1 // pred_check
      _
    $region31: #{tpu_custom_call.1} parent=1 // pred_check_branch
      %283 = sbr.rel (0) target = $region33
    $region32: #{tpu_custom_call.1} parent=1 // pred_region
      %s285 = ssub.s32 128, 128
      %286 = vsyncadd [#allocation3], %s285
      %s288 = sshll.u32 [#allocation2], 4
      %s289 = int_to_ptr.vmem [resolvable:$true] %s288
      %291 = dma.vmem_to_hbm [thread:$0]  %s289, 128, %s7, [#allocation3]
    $region33: #{tpu_custom_call.1} parent=1 // pred_fallthru
      _
    // Predicated region
    $region34: #{tpu_custom_call.1} parent=1 // pred_check
      _
    $region35: #{tpu_custom_call.1} parent=1 // pred_check_branch
      %293 = sbr.rel (0) target = $region37
    $region36: #{tpu_custom_call.1} parent=1 // pred_region
      %294 = dma.done [#allocation3], 128
    $region37: #{tpu_custom_call.1} parent=1 // pred_fallthru
      _
    %295 = vsyncpa [#allocation3], 1

</llo_original>
